<compile_context>
chip_gen: v7x
topology: tpu7x:2x2x1
jax: 0.10.0
libtpu: 0.0.40
codegen_flags: <defaults>
</compile_context>

<pallas_src>
import jax
import jax.numpy as jnp
from jax.experimental import pallas as pl
from jax.experimental.pallas import tpu as pltpu

LANE = 128
SUB = 8


def _bce_sum_kernel(n_ref, x_ref, t_ref, acc_ref):
    c = pl.program_id(0)          # shard (megacore) axis
    i = pl.program_id(1)          # reduction step within the shard

    @pl.when(i == 0)
    def _():
        acc_ref[...] = jnp.zeros_like(acc_ref)

    tr = x_ref.shape[0]
    n = n_ref[0]
    # Logical (unclamped) block index -> element offset of this tile.
    base = (c * pl.num_programs(1) + i) * (tr * LANE)
    is_full = (base + tr * LANE) <= n

    # Fast path: fully-interior block. Pure VPU/EUP math, no iota / compare /
    # select per element, lane-dense unmasked accumulator adds.
    @pl.when(is_full)
    def _():
        x = x_ref[...].astype(jnp.float32)   # cast in-vreg; HBM stays narrow
        t = t_ref[...].astype(jnp.float32)
        # Numerically stable BCE-with-logits (== torch.nn.BCEWithLogitsLoss):
        #   max(x, 0) - x*t + log1p(exp(-|x|))
        bce = jnp.maximum(x, 0.0) - x * t + jnp.log1p(jnp.exp(-jnp.abs(x)))
        # (tr, 128) -> (tr//8, 8, 128) splits on native (8,128) tile
        # boundaries, so it stays a view; sum(axis=0) is vreg-wise VPU adds.
        acc_ref[...] += bce.reshape(tr // SUB, SUB, LANE).sum(axis=0)

    # Slow path: partial last block of the array or a clamped re-read block.
    # Runs at most once per shard, so the mask cost is negligible.
    @pl.when(jnp.logical_not(is_full))
    def _():
        x = x_ref[...].astype(jnp.float32)
        t = t_ref[...].astype(jnp.float32)
        rid = jax.lax.broadcasted_iota(jnp.int32, (tr, LANE), 0)
        lid = jax.lax.broadcasted_iota(jnp.int32, (tr, LANE), 1)
        valid = (base + rid * LANE + lid) < n
        # Sanitize pad/OOB garbage before the math (cheap: tail block only).
        x = jnp.where(valid, x, 0.0)
        t = jnp.where(valid, t, 0.0)
        bce = jnp.maximum(x, 0.0) - x * t + jnp.log1p(jnp.exp(-jnp.abs(x)))
        # Load-bearing select: sanitized pad elements give bce = log(2).
        bce = jnp.where(valid, bce, 0.0)
        acc_ref[...] += bce.reshape(tr // SUB, SUB, LANE).sum(axis=0)


def _default_num_shards():
    """2 shards only on 2-TensorCore parts (v7x); 1 elsewhere."""
    try:
        kind = jax.devices()[0].device_kind.lower()
    except Exception:
        return 1
    return 2 if "v7" in kind else 1


def loss_ce(y_hat, y, *, tile_rows=None, num_shards=None):
    """mean(BCEWithLogits(y_hat, y.float())) as a scalar f32."""
    x = y_hat.reshape(-1)
    t = y.reshape(-1)
    n = x.size
    if n == 0:
        # torch's mean over an empty tensor is NaN.
        return jnp.float32(jnp.nan)
    # int32 index math inside the kernel.
    assert n < 2**31, "loss_ce: tensors must have fewer than 2**31 elements"

    itemsize = max(jnp.dtype(x.dtype).itemsize, jnp.dtype(t.dtype).itemsize)
    if tile_rows is None:
        # ~4 MiB per input buffer per step regardless of dtype width.
        tile_rows = 8192 if itemsize >= 4 else 16384
    assert tile_rows % SUB == 0

    if num_shards is None:
        num_shards = _default_num_shards()

    # Pad (zeros) only up to a multiple of 8*128; a no-op bitcast reshape when
    # n is already a multiple of 1024 (the typical B*C*H*W case). Pad values
    # never reach the sums thanks to the in-kernel mask.
    padded = pl.cdiv(n, SUB * LANE) * (SUB * LANE)
    if padded != n:
        x = jnp.pad(x, (0, padded - n))
        t = jnp.pad(t, (0, padded - n))
    rows = padded // LANE
    x2 = x.reshape(rows, LANE)
    t2 = t.reshape(rows, LANE)

    tr = min(tile_rows, rows)                  # both multiples of 8
    total_blocks = pl.cdiv(rows, tr)
    shards = max(1, min(num_shards, total_blocks))
    inner = pl.cdiv(total_blocks, shards)

    if shards == 1:
        # No clamp needed: inner == total_blocks and c == 0 always.
        def in_map(c, i, n_ref):
            return (i, 0)
    else:
        def in_map(c, i, n_ref):
            # Clamp so the DMA start never goes past the array; any re-read
            # block is fully masked in-kernel and contributes exactly zero.
            return (jnp.minimum(c * inner + i, total_blocks - 1), 0)

    # Double-buffered footprint of the two inputs + headroom; capped well
    # under v7x's 64 MiB per-TC VMEM.
    in_buf_bytes = 2 * tr * LANE * (jnp.dtype(x2.dtype).itemsize
                                    + jnp.dtype(t2.dtype).itemsize)
    vmem_limit = min(max(32 * 1024 * 1024, in_buf_bytes + 8 * 1024 * 1024),
                     56 * 1024 * 1024)

    partials = pl.pallas_call(
        _bce_sum_kernel,
        out_shape=jax.ShapeDtypeStruct((shards, SUB, LANE), jnp.float32),
        grid_spec=pltpu.PrefetchScalarGridSpec(
            num_scalar_prefetch=1,
            grid=(shards, inner),
            in_specs=[
                pl.BlockSpec((tr, LANE), in_map),
                pl.BlockSpec((tr, LANE), in_map),
            ],
            out_specs=pl.BlockSpec((None, SUB, LANE),
                                   lambda c, i, n_ref: (c, 0, 0)),
        ),
        compiler_params=pltpu.CompilerParams(
            dimension_semantics=("parallel", "arbitrary"),
            vmem_limit_bytes=vmem_limit,
        ),
    )(jnp.array([n], jnp.int32), x2, t2)

    # O(1K)-element finishing sum + mean in plain JAX.
    return jnp.sum(partials) / jnp.float32(n)


def _loss_ce_ref(y_hat, y):
    """Pure-JAX reference for sanity checking."""
    x = y_hat.astype(jnp.float32)
    t = y.astype(jnp.float32)
    return jnp.mean(jnp.maximum(x, 0.0) - x * t + jnp.log1p(jnp.exp(-jnp.abs(x))))


if __name__ == "__main__":
    key = jax.random.PRNGKey(0)
    k1, k2, k3, k4 = jax.random.split(key, 4)

    # Binary segmentation style inputs: logits and {0,1} mask, NCHW.
    y_hat = jax.random.normal(k1, (2, 1, 16, 16), dtype=jnp.float32)
    y = (jax.random.uniform(k2, (2, 1, 16, 16)) > 0.5).astype(jnp.float32)

    out = jax.block_until_ready(jax.jit(loss_ce)(y_hat, y))
    ref = _loss_ce_ref(y_hat, y)
    assert jnp.allclose(out, ref, atol=1e-5, rtol=1e-5), (out, ref)

    # Odd element count (not a multiple of 1024) to exercise the masked tail.
    y_hat2 = jax.random.normal(k3, (2, 3, 7, 5), dtype=jnp.float32)
    y2 = (jax.random.uniform(k4, (2, 3, 7, 5)) > 0.5).astype(jnp.float32)
    out2 = jax.block_until_ready(jax.jit(loss_ce)(y_hat2, y2))
    ref2 = _loss_ce_ref(y_hat2, y2)
    assert jnp.allclose(out2, ref2, atol=1e-5, rtol=1e-5), (out2, ref2)

    print("KERNEL_OK")
</pallas_src>

<mosaic_0001>
module attributes {stable_mosaic.version = 11 : i64} {
  func.func @_bce_sum_kernel(%arg0: i32, %arg1: i32, %arg2: memref<1xi32, #tpu.memory_space<smem>>, %arg3: memref<8x128xf32, #tpu.memory_space<vmem>>, %arg4: memref<8x128xf32, #tpu.memory_space<vmem>>, %arg5: memref<1x8x128xf32, #tpu.memory_space<vmem>>) attributes {dimension_semantics = [#tpu.dimension_semantics<parallel>, #tpu.dimension_semantics<arbitrary>], iteration_bounds = array<i64: 1, 1>, scalar_prefetch = 1 : i64, scratch_operands = 0 : i64, tpu.core_type = #tpu.core_type<tc>, window_params = [{transform_indices = @transform_0, window_bounds = array<i64: 8, 128>}, {transform_indices = @transform_1, window_bounds = array<i64: 8, 128>}, {transform_indices = @transform_2, window_bounds = array<i64: 1, 8, 128>}]} {
    %c0_i32 = arith.constant 0 : i32
    %0 = arith.cmpi eq, %arg1, %c0_i32 : i32
    %1 = arith.extui %0 : i1 to i32
    %c0_i32_0 = arith.constant 0 : i32
    %2 = arith.cmpi ne, %1, %c0_i32_0 : i32
    scf.if %2 {
      %cst = arith.constant 0.000000e+00 : f32
      %14 = vector.broadcast %cst : f32 to vector<8x128xf32>
      %c0_4 = arith.constant 0 : index
      %c0_5 = arith.constant 0 : index
      %c0_6 = arith.constant 0 : index
      %15 = vector.load %arg5[%c0_4, %c0_5, %c0_6] : memref<1x8x128xf32, #tpu.memory_space<vmem>>, vector<1x8x128xf32>
      %16 = vector.shape_cast %15 : vector<1x8x128xf32> to vector<8x128xf32>
      %17 = vector.shape_cast %14 : vector<8x128xf32> to vector<1x8x128xf32>
      tpu.vector_store %arg5[%c0_4, %c0_5, %c0_6], %17 {strides = array<i32>} : memref<1x8x128xf32, #tpu.memory_space<vmem>>, vector<1x8x128xf32>,
    } else {
    }
    %c0 = arith.constant 0 : index
    %3 = memref.load %arg2[%c0] : memref<1xi32, #tpu.memory_space<smem>>
    %c1_i32 = arith.constant 1 : i32
    %4 = arith.muli %arg0, %c1_i32 : i32
    %5 = arith.addi %4, %arg1 : i32
    %c1024_i32 = arith.constant 1024 : i32
    %6 = arith.muli %5, %c1024_i32 : i32
    %c1024_i32_1 = arith.constant 1024 : i32
    %7 = arith.addi %6, %c1024_i32_1 : i32
    %8 = arith.cmpi sle, %7, %3 : i32
    %9 = arith.extui %8 : i1 to i32
    %c0_i32_2 = arith.constant 0 : i32
    %10 = arith.cmpi ne, %9, %c0_i32_2 : i32
    scf.if %10 {
      %c0_4 = arith.constant 0 : index
      %c0_5 = arith.constant 0 : index
      %14 = vector.load %arg3[%c0_4, %c0_5] : memref<8x128xf32, #tpu.memory_space<vmem>>, vector<8x128xf32>
      %c0_6 = arith.constant 0 : index
      %c0_7 = arith.constant 0 : index
      %15 = vector.load %arg4[%c0_6, %c0_7] : memref<8x128xf32, #tpu.memory_space<vmem>>, vector<8x128xf32>
      %cst = arith.constant 0.000000e+00 : f32
      %16 = vector.broadcast %cst : f32 to vector<8x128xf32>
      %17 = arith.maximumf %14, %16 : vector<8x128xf32>
      %18 = arith.mulf %14, %15 : vector<8x128xf32>
      %19 = arith.subf %17, %18 : vector<8x128xf32>
      %20 = math.absf %14 : vector<8x128xf32>
      %cst_8 = arith.constant 0.000000e+00 : f32
      %21 = vector.broadcast %cst_8 : f32 to vector<8x128xf32>
      %22 = arith.subf %21, %20 : vector<8x128xf32>
      %23 = math.exp %22 : vector<8x128xf32>
      %24 = math.log1p %23 : vector<8x128xf32>
      %25 = arith.addf %19, %24 : vector<8x128xf32>
      %c0_9 = arith.constant 0 : index
      %c0_10 = arith.constant 0 : index
      %c0_11 = arith.constant 0 : index
      %26 = vector.load %arg5[%c0_9, %c0_10, %c0_11] : memref<1x8x128xf32, #tpu.memory_space<vmem>>, vector<1x8x128xf32>
      %27 = vector.shape_cast %26 : vector<1x8x128xf32> to vector<8x128xf32>
      %28 = vector.shape_cast %25 : vector<8x128xf32> to vector<1x8x128xf32>
      %cst_12 = arith.constant dense<0.000000e+00> : vector<8x128xf32>
      %29 = vector.multi_reduction <add>, %28, %cst_12 [0] : vector<1x8x128xf32> to vector<8x128xf32>
      %30 = arith.addf %27, %29 : vector<8x128xf32>
      %c0_13 = arith.constant 0 : index
      %c0_14 = arith.constant 0 : index
      %c0_15 = arith.constant 0 : index
      %31 = vector.load %arg5[%c0_13, %c0_14, %c0_15] : memref<1x8x128xf32, #tpu.memory_space<vmem>>, vector<1x8x128xf32>
      %32 = vector.shape_cast %31 : vector<1x8x128xf32> to vector<8x128xf32>
      %33 = vector.shape_cast %30 : vector<8x128xf32> to vector<1x8x128xf32>
      tpu.vector_store %arg5[%c0_13, %c0_14, %c0_15], %33 {strides = array<i32>} : memref<1x8x128xf32, #tpu.memory_space<vmem>>, vector<1x8x128xf32>,
    } else {
    }
    %true = arith.constant true
    %11 = arith.xori %8, %true : i1
    %12 = arith.extui %11 : i1 to i32
    %c0_i32_3 = arith.constant 0 : i32
    %13 = arith.cmpi ne, %12, %c0_i32_3 : i32
    scf.if %13 {
      %c0_4 = arith.constant 0 : index
      %c0_5 = arith.constant 0 : index
      %14 = vector.load %arg3[%c0_4, %c0_5] : memref<8x128xf32, #tpu.memory_space<vmem>>, vector<8x128xf32>
      %c0_6 = arith.constant 0 : index
      %c0_7 = arith.constant 0 : index
      %15 = vector.load %arg4[%c0_6, %c0_7] : memref<8x128xf32, #tpu.memory_space<vmem>>, vector<8x128xf32>
      %16 = tpu.iota {dimensions = array<i32: 0>} : vector<8x128xi32>
      %17 = tpu.iota {dimensions = array<i32: 1>} : vector<8x128xi32>
      %c128_i32 = arith.constant 128 : i32
      %18 = vector.broadcast %c128_i32 : i32 to vector<8x128xi32>
      %19 = arith.muli %16, %18 : vector<8x128xi32>
      %20 = vector.broadcast %6 : i32 to vector<8x128xi32>
      %21 = arith.addi %20, %19 : vector<8x128xi32>
      %22 = arith.addi %21, %17 : vector<8x128xi32>
      %23 = vector.broadcast %3 : i32 to vector<8x128xi32>
      %24 = arith.cmpi slt, %22, %23 : vector<8x128xi32>
      %cst = arith.constant 0.000000e+00 : f32
      %25 = vector.broadcast %cst : f32 to vector<8x128xf32>
      %26 = arith.select %24, %14, %25 : vector<8x128xi1>, vector<8x128xf32>
      %cst_8 = arith.constant 0.000000e+00 : f32
      %27 = vector.broadcast %cst_8 : f32 to vector<8x128xf32>
      %28 = arith.select %24, %15, %27 : vector<8x128xi1>, vector<8x128xf32>
      %cst_9 = arith.constant 0.000000e+00 : f32
      %29 = vector.broadcast %cst_9 : f32 to vector<8x128xf32>
      %30 = arith.maximumf %26, %29 : vector<8x128xf32>
      %31 = arith.mulf %26, %28 : vector<8x128xf32>
      %32 = arith.subf %30, %31 : vector<8x128xf32>
      %33 = math.absf %26 : vector<8x128xf32>
      %cst_10 = arith.constant 0.000000e+00 : f32
      %34 = vector.broadcast %cst_10 : f32 to vector<8x128xf32>
      %35 = arith.subf %34, %33 : vector<8x128xf32>
      %36 = math.exp %35 : vector<8x128xf32>
      %37 = math.log1p %36 : vector<8x128xf32>
      %38 = arith.addf %32, %37 : vector<8x128xf32>
      %cst_11 = arith.constant 0.000000e+00 : f32
      %39 = vector.broadcast %cst_11 : f32 to vector<8x128xf32>
      %40 = arith.select %24, %38, %39 : vector<8x128xi1>, vector<8x128xf32>
      %c0_12 = arith.constant 0 : index
      %c0_13 = arith.constant 0 : index
      %c0_14 = arith.constant 0 : index
      %41 = vector.load %arg5[%c0_12, %c0_13, %c0_14] : memref<1x8x128xf32, #tpu.memory_space<vmem>>, vector<1x8x128xf32>
      %42 = vector.shape_cast %41 : vector<1x8x128xf32> to vector<8x128xf32>
      %43 = vector.shape_cast %40 : vector<8x128xf32> to vector<1x8x128xf32>
      %cst_15 = arith.constant dense<0.000000e+00> : vector<8x128xf32>
      %44 = vector.multi_reduction <add>, %43, %cst_15 [0] : vector<1x8x128xf32> to vector<8x128xf32>
      %45 = arith.addf %42, %44 : vector<8x128xf32>
      %c0_16 = arith.constant 0 : index
      %c0_17 = arith.constant 0 : index
      %c0_18 = arith.constant 0 : index
      %46 = vector.load %arg5[%c0_16, %c0_17, %c0_18] : memref<1x8x128xf32, #tpu.memory_space<vmem>>, vector<1x8x128xf32>
      %47 = vector.shape_cast %46 : vector<1x8x128xf32> to vector<8x128xf32>
      %48 = vector.shape_cast %45 : vector<8x128xf32> to vector<1x8x128xf32>
      tpu.vector_store %arg5[%c0_16, %c0_17, %c0_18], %48 {strides = array<i32>} : memref<1x8x128xf32, #tpu.memory_space<vmem>>, vector<1x8x128xf32>,
    } else {
    }
    return
  }
  func.func @transform_0(%arg0: i32, %arg1: i32, %arg2: memref<1xi32, #tpu.memory_space<smem>>) -> (i32, i32) {
    %c0_i32 = arith.constant 0 : i32
    %c0_i32_0 = arith.constant 0 : i32
    return %arg1, %c0_i32 : i32, i32
  }
  func.func @transform_1(%arg0: i32, %arg1: i32, %arg2: memref<1xi32, #tpu.memory_space<smem>>) -> (i32, i32) {
    %c0_i32 = arith.constant 0 : i32
    %c0_i32_0 = arith.constant 0 : i32
    return %arg1, %c0_i32 : i32, i32
  }
  func.func @transform_2(%arg0: i32, %arg1: i32, %arg2: memref<1xi32, #tpu.memory_space<smem>>) -> (i32, i32, i32) {
    %c0_i32 = arith.constant 0 : i32
    %c0_i32_0 = arith.constant 0 : i32
    %c0_i32_1 = arith.constant 0 : i32
    return %arg0, %c0_i32, %c0_i32_0 : i32, i32, i32
  }
}

</mosaic_0001>

<llo_original>
// kernel: loss_ce.1
$region0: #{loss_ce.1}
  #allocation0 [shape = 'u32[]', space=smem, size = 0x4, offset = 0x4, fixed_abs, tag = 'smem constant byte address 0x4 - core index']
  #allocation1 [shape = 'u32[144,128]{1,0:T(1,128)}', space=vmem, size = 0x12000, scoped, tag = 'internal scratch']
  #allocation2 [shape = 's32[1]{0}', space=sflag, size = 0x4, scoped, tag = 'scoped memory for loss_ce.1']
  #allocation3 [shape = 's32[1]{0:T(128)S(6)}', space=smem, size = 0x200, scoped, tag = 'prefetched SMEM operand 0']
  %s0 = inlined_call_operand.<no memory space> [shape: s32[1], index: 0, kind: input, shape index: {}]
  %s1 = inlined_call_operand.vmem [shape: f32[8,128], index: 1, kind: input, shape index: {}]
  %s2 = inlined_call_operand.vmem [shape: f32[8,128], index: 2, kind: input, shape index: {}]
  %s3 = inlined_call_operand.vmem [shape: f32[1,8,128], index: 3, kind: output, shape index: {}]
  %s4 = sld [smem:[#allocation0]]
  $region30: #{loss_ce.1} parent=0
    _
  %s6 = ssub.s32 1, %s4
  %s7 = scalar_select 0, %s6, %s4
  %8 = sst [smem:[#allocation3]] %s0
  // Predicated region
  $region2: #{loss_ce.1} parent=0 // pred_check
    _
  $region3: #{loss_ce.1} parent=0 // pred_check_branch
    %10 = sbr.rel (0) target = $region5
  $region4: #{loss_ce.1} parent=0 // pred_region
    _
  $region5: #{loss_ce.1} parent=0 // pred_fallthru
    _
  // Predicated region
  $region6: #{loss_ce.1} parent=0 // pred_check
    _
  $region7: #{loss_ce.1} parent=0 // pred_check_branch
    %12 = sbr.rel (0) target = $region9
  $region8: #{loss_ce.1} parent=0 // pred_region
    _
  $region9: #{loss_ce.1} parent=0 // pred_fallthru
    _
  %p13 = scmp.eq.s32.totalorder 0, 0
  // Predicated region
  $region10: #{loss_ce.1} parent=0 // pred_check
    %p14 = pneg %p13
  $region11: #{loss_ce.1} parent=0 // pred_check_branch
    %16 = sbr.rel (%p14) target = $region13
  $region12: #{loss_ce.1} parent=0 // pred_region
    %17 = vst [vmem:[%s3] sm:$0xff] 0.0
  $region13: #{loss_ce.1} parent=0 // pred_fallthru
    _
  %s18 = sld [smem:[#allocation3]]
  %s19 = sadd.s32 0, 0
  %s20 = smul.u32 %s19, 1024
  %s21 = sadd.s32 %s20, 1024
  %p22 = scmp.le.s32.totalorder %s21, %s18
  // Predicated region
  $region14: #{loss_ce.1} parent=0 // pred_check
    %p23 = pneg %p22
  $region15: #{loss_ce.1} parent=0 // pred_check_branch
    %25 = sbr.rel (%p23) target = $region17
  $region16: #{loss_ce.1} parent=0 // pred_region
    %v26 = vld [vmem:[%s1] sm:$0xff]
    %v27 = vld [vmem:[%s2] sm:$0xff]
    %v28 = vmax.f32 %v26, 0.0
    %v29 = vmul.f32 %v26, %v27
    %v30 = vsub.f32 %v28, %v29
    %v31 = vand.u32 2147483647, %v26
    %v32 = vsub.f32 0.0, %v31
    %v33 = vmul.f32 %v32, 1.442695
    %v34 = vpow.pop %v33
    %v35 = vadd.f32 %v34, 1.0
    %v36 = vlog2.pop %v35
    %v37 = vmul.f32 %v36, 0.6931472
    %v38 = vmul.f32 -0.5, %v34
    %v39 = vadd.f32 %v38, 1.0
    %v40 = vmul.f32 %v39, %v34
    %v41 = vand.u32 2147483647, %v34
    %vm42 = vcmp.lt.f32.partialorder %v41, 0.0004427343
    %v43 = vsel %vm42, %v40, %v37
    %v44 = vadd.f32 %v30, %v43
    %v45 = vld [vmem:[%s3] sm:$0xff]
    %v46 = vadd.f32 %v44, 0.0
    %v47 = vadd.f32 %v45, %v46
    %48 = vst [vmem:[%s3] sm:$0xff] %v47
  $region17: #{loss_ce.1} parent=0 // pred_fallthru
    _
  %p49 = scmp.gt.s32.totalorder %s21, %s18
  // Predicated region
  $region18: #{loss_ce.1} parent=0 // pred_check
    %p50 = pneg %p49
  $region19: #{loss_ce.1} parent=0 // pred_check_branch
    %52 = sbr.rel (%p50) target = $region21
  $region20: #{loss_ce.1} parent=0 // pred_region
    %v53 = vld [vmem:[%s1] sm:$0xff]
    %v54 = vld [vmem:[%s2] sm:$0xff]
    %v55 = vlaneseq
    %v56 = vshrl.u32 %v55, 7
    %v57 = vlaneseq
    %v58 = vand.u32 %v57, 127
    %v59 = vmul.u32 %v56, 128
    %v60 = vstv %s20
    %v61 = vadd.s32 %v60, %v59
    %v62 = vadd.s32 %v61, %v58
    %v63 = vstv %s18
    %vm64 = vcmp.lt.s32.totalorder %v62, %v63
    %v65 = vsel %vm64, %v53, 0.0
    %v66 = vsel %vm64, %v54, 0.0
    %v67 = vmax.f32 %v65, 0.0
    %v68 = vmul.f32 %v65, %v66
    %v69 = vsub.f32 %v67, %v68
    %v70 = vand.u32 2147483647, %v65
    %v71 = vsub.f32 0.0, %v70
    %v72 = vmul.f32 %v71, 1.442695
    %v73 = vpow.pop %v72
    %v74 = vadd.f32 %v73, 1.0
    %v75 = vlog2.pop %v74
    %v76 = vmul.f32 %v75, 0.6931472
    %v77 = vmul.f32 -0.5, %v73
    %v78 = vadd.f32 %v77, 1.0
    %v79 = vmul.f32 %v78, %v73
    %v80 = vand.u32 2147483647, %v73
    %vm81 = vcmp.lt.f32.partialorder %v80, 0.0004427343
    %v82 = vsel %vm81, %v79, %v76
    %v83 = vadd.f32 %v69, %v82
    %v84 = vsel %vm64, %v83, 0.0
    %v85 = vld [vmem:[%s3] sm:$0xff]
    %v86 = vadd.f32 %v84, 0.0
    %v87 = vadd.f32 %v85, %v86
    %88 = vst [vmem:[%s3] sm:$0xff] %v87
  $region21: #{loss_ce.1} parent=0 // pred_fallthru
    _
  // Predicated region
  $region22: #{loss_ce.1} parent=0 // pred_check
    _
  $region23: #{loss_ce.1} parent=0 // pred_check_branch
    %90 = sbr.rel (0) target = $region25
  $region24: #{loss_ce.1} parent=0 // pred_region
    _
  $region25: #{loss_ce.1} parent=0 // pred_fallthru
    _
  // Predicated region
  $region26: #{loss_ce.1} parent=0 // pred_check
    _
  $region27: #{loss_ce.1} parent=0 // pred_check_branch
    %92 = sbr.rel (0) target = $region29
  $region28: #{loss_ce.1} parent=0 // pred_region
    _
  $region29: #{loss_ce.1} parent=0 // pred_fallthru
    _

</llo_original>
